<compile_context>
chip_gen: v6e
topology: v6e:2x2x1
jax: 0.10.0
libtpu: 0.0.40
codegen_flags: <defaults>
</compile_context>

<pallas_src>
import functools

import jax
import jax.numpy as jnp
from jax.experimental import pallas as pl
from jax.experimental.pallas import tpu as pltpu


_VMEM_LIMIT = 32 * 1024 * 1024


def _pick_tile(max_cols, slab_rows, budget_bytes):
    """Largest lane tile (512/256/128) <= max_cols whose f32 (slab_rows x tile)
    slab fits the budget; below 128 lanes fall back to the full (small) extent."""
    if max_cols < 128:
        return max_cols
    for t in (512, 256, 128):
        if t <= max_cols and slab_rows * t * 4 <= budget_bytes:
            return t
    return 128


# ----------------------------------------------------------------------------
# Kernel 1: fused pairwise distance + top-k neighbour indices (lane-dense out)
# ----------------------------------------------------------------------------
def _knn_topk_kernel(key_ref, qry_ref, idx_ref, scores_ref, *, k):
    # key_ref:    (1, C+1, N)   [x ; -||x_j||^2], resident across query tiles
    # qry_ref:    (1, C+1, tm)  [2*x ; 1] for the current query tile
    # idx_ref:    (1, k, tm)    int32 neighbour ids, lane-dense over points
    # scores_ref: (N, tm)       f32 VMEM scratch, masked in place
    n = key_ref.shape[2]

    # scores[j, p] = 2 <x_j, x_p> - ||x_j||^2 : one MXU matmul, no VPU fix-up.
    scores_ref[...] = jax.lax.dot_general(
        key_ref[0].astype(jnp.float32), qry_ref[0].astype(jnp.float32),
        (((0,), (0,)), ((), ())), preferred_element_type=jnp.float32)

    row = jax.lax.broadcasted_iota(
        jnp.int32, scores_ref.shape, 0).astype(jnp.float32)
    masked = jnp.float32(-3.0e38)
    rows = []
    # Iterative top-k (k is small).  The slab lives in scratch and is updated
    # in place, so no (N, tm) SSA copies survive across iterations.  Ties pick
    # the lowest candidate index.
    # TODO(synk): fuse max+argmax into one packed-key reduce (2 passes/neighbour).
    for i in range(k):
        s = scores_ref[...]
        m = jnp.max(s, axis=0, keepdims=True)                           # (1, tm)
        sel = jnp.min(jnp.where(s >= m, row, jnp.float32(n)),
                      axis=0, keepdims=True)                            # (1, tm)
        rows.append(sel)
        scores_ref[...] = jnp.where(row == sel, masked, s)
    idx_ref[0] = jnp.concatenate(rows, axis=0).astype(jnp.int32)


@functools.partial(jax.jit, static_argnames=("k",))
def knn_indices(x, *, k):
    """x: (B, C, N) f32 -> (B, k, N) int32 nearest-neighbour ids (self included)."""
    B, C, N = x.shape
    if N >= (1 << 24):
        raise ValueError("N too large for exact f32 index arithmetic")
    sq = jnp.sum(x * x, axis=1, keepdims=True)                      # (B, 1, N)
    key_op = jnp.concatenate([x, -sq], axis=1)                      # (B, C+1, N)
    qry_op = jnp.concatenate([2.0 * x, jnp.ones_like(sq)], axis=1)  # (B, C+1, N)
    tm = _pick_tile(N, N, budget_bytes=6 * 1024 * 1024)
    grid = (B, pl.cdiv(N, tm))
    return pl.pallas_call(
        functools.partial(_knn_topk_kernel, k=k),
        out_shape=jax.ShapeDtypeStruct((B, k, N), jnp.int32),
        grid=grid,
        in_specs=[
            pl.BlockSpec((1, C + 1, N), lambda b, r: (b, 0, 0)),    # keys, resident
            pl.BlockSpec((1, C + 1, tm), lambda b, r: (b, 0, r)),   # query tile
        ],
        out_specs=pl.BlockSpec((1, k, tm), lambda b, r: (b, 0, r)),
        scratch_shapes=[pltpu.VMEM((N, tm), jnp.float32)],
        compiler_params=pltpu.CompilerParams(
            dimension_semantics=("parallel", "parallel"),
            vmem_limit_bytes=_VMEM_LIMIT),
    )(key_op, qry_op)


# ----------------------------------------------------------------------------
# Kernel 2: fused gather + edge feature + Conv2d + mean over neighbours
# ----------------------------------------------------------------------------
def _edge_conv_kernel(x_ref, idx_ref, wd_ref, wm_ref, b_ref, o_ref, *, ksize):
    # x_ref:   (1, C, Np)      zero-padded points, resident per batch (gather src)
    # idx_ref: (1, k, Np)      neighbour ids, lane-dense, resident per batch
    # wd_ref:  (ks*ks, O, C)   conv weights for the "x_j - x_i" channels
    # wm_ref:  (ks*ks, O, C)   (W_center - W_diff)
    # b_ref:   (O, 1)          bias
    # o_ref:   (1, O, tp)      output tile (channels-first, lane-dense in points)
    np_ = x_ref.shape[2]
    k = idx_ref.shape[1]
    o = o_ref.shape[1]
    tp = o_ref.shape[2]
    ko = k - ksize + 1
    inv_ko = 1.0 / float(ko)
    base = pl.multiple_of(pl.program_id(1) * tp, tp)

    x_all = x_ref[0].astype(jnp.float32)                             # (C, Np)
    iota_v = jax.lax.broadcasted_iota(jnp.int32, (np_, tp), 0)       # point-id grid
    acc = jnp.zeros((o, tp), jnp.float32)

    # TODO(synk): arch-specific variants (bf16 one-hot S on v6e/v7x, chunked
    # gather-source axis on v7x) kept out to preserve exact f32 results.
    for di in range(ksize):
        xd = x_ref[0, :, pl.ds(base + di, tp)].astype(jnp.float32)   # (C, tp) centres
        for dj in range(ksize):
            # One-hot neighbour-count matrix summed over the Ko-wide window:
            #   s[v, p] = #{ q : idx[q + dj, base + p + di] == v }
            s = jnp.zeros((np_, tp), jnp.float32)
            for q in range(ko):
                nbr = idx_ref[0, q + dj:q + dj + 1, pl.ds(base + di, tp)]  # (1, tp)
                s = s + (iota_v == nbr).astype(jnp.float32)
            # Windowed mean of gathered neighbour features: one MXU matmul.
            g = jnp.dot(x_all, s, preferred_element_type=jnp.float32) * inv_ko
            t = di * ksize + dj
            acc = acc + jnp.dot(wd_ref[t], g, preferred_element_type=jnp.float32)
            acc = acc + jnp.dot(wm_ref[t], xd, preferred_element_type=jnp.float32)

    o_ref[0] = (acc + b_ref[...]).astype(o_ref.dtype)


def edge_conv_mean(x_p, idx_p, wd, wm, bias_col, *, ksize, n_out, tp):
    """x_p: (B,C,Np); idx_p: (B,k,Np) int32; wd/wm: (ks*ks,O,C); bias_col: (O,1)."""
    B, C, Np = x_p.shape
    k = idx_p.shape[1]
    O = wd.shape[1]
    grid = (B, pl.cdiv(n_out, tp))
    return pl.pallas_call(
        functools.partial(_edge_conv_kernel, ksize=ksize),
        out_shape=jax.ShapeDtypeStruct((B, O, n_out), jnp.float32),
        grid=grid,
        in_specs=[
            pl.BlockSpec((1, C, Np), lambda b, r: (b, 0, 0)),        # gather source
            pl.BlockSpec((1, k, Np), lambda b, r: (b, 0, 0)),        # neighbour ids
            pl.BlockSpec((ksize * ksize, O, C), lambda b, r: (0, 0, 0)),
            pl.BlockSpec((ksize * ksize, O, C), lambda b, r: (0, 0, 0)),
            pl.BlockSpec((O, 1), lambda b, r: (0, 0)),
        ],
        out_specs=pl.BlockSpec((1, O, tp), lambda b, r: (b, 0, r)),
        compiler_params=pltpu.CompilerParams(
            dimension_semantics=("parallel", "parallel"),
            vmem_limit_bytes=_VMEM_LIMIT),
    )(x_p, idx_p, wd, wm, bias_col)


# ----------------------------------------------------------------------------
# Forward pass of knn_feature
# ----------------------------------------------------------------------------
@functools.partial(jax.jit, static_argnames=("k", "ksize"))
def knn_feature_forward(x, weight, bias, *, k, ksize):
    """x: (B, C, N) f32; weight: (O, 2C, ks, ks); bias: (O,) -> (B, O, N-ks+1)."""
    B, C, N = x.shape
    O = weight.shape[0]
    if ksize < 1 or k < ksize or N < ksize or k > N:
        raise ValueError(f"invalid config: k={k}, ksize={ksize}, N={N}")
    n_out = N - ksize + 1

    idx = knn_indices(x, k=k)                # (B, k, N), already kernel-2 layout

    # Output tile; zero-pad the point axis so every in-kernel haloed window
    # slice (ksize > 1 and/or a partial last tile) stays in bounds.
    tp = _pick_tile(n_out, N, budget_bytes=4 * 1024 * 1024)
    n_tiles = pl.cdiv(n_out, tp)
    n_pad = max(N, n_tiles * tp + ksize - 1)
    if n_pad > N:
        x_p = jnp.pad(x, ((0, 0), (0, 0), (0, n_pad - N)))
        idx_p = jnp.pad(idx, ((0, 0), (0, 0), (0, n_pad - N)))
    else:
        x_p, idx_p = x, idx

    # Split conv weights into "diff" (first C input channels) and "centre"
    # (last C) halves, laid out (ks*ks, O, C) for static in-kernel indexing.
    wd = jnp.transpose(weight[:, :C], (2, 3, 0, 1)).reshape(ksize * ksize, O, C)
    wc = jnp.transpose(weight[:, C:], (2, 3, 0, 1)).reshape(ksize * ksize, O, C)

    return edge_conv_mean(x_p, idx_p, wd, wc - wd, bias.reshape(O, 1),
                          ksize=ksize, n_out=n_out, tp=tp)


# ----------------------------------------------------------------------------
# Plain-JAX reference (post-knn part), used only for the self-check below.
# ----------------------------------------------------------------------------
def _reference_forward(x, weight, bias, idx_bnk):
    xt = jnp.transpose(x, (0, 2, 1))                                     # (B, N, C)
    feat = jax.vmap(lambda a, i: a[i])(xt, idx_bnk)                      # (B, N, k, C)
    cen = xt[:, :, None, :]
    g = jnp.concatenate([feat - cen, jnp.broadcast_to(cen, feat.shape)], axis=-1)
    g = jnp.transpose(g, (0, 3, 1, 2))                                   # (B, 2C, N, k)
    out = jax.lax.conv_general_dilated(
        g, weight, window_strides=(1, 1), padding="VALID",
        dimension_numbers=("NCHW", "OIHW", "NCHW"))
    out = out + bias[None, :, None, None]
    return jnp.mean(out, axis=-1)                                        # (B, O, No)


# ----------------------------------------------------------------------------
# Example / smoke test
# ----------------------------------------------------------------------------
if __name__ == "__main__":
    nb_neighbors = 10   # k
    in_channel = 4      # C
    out_channel = 32    # O
    ksize = 1
    B, N = 2, 16

    key = jax.random.PRNGKey(0)
    kx, kw, kb = jax.random.split(key, 3)

    fan_in = 2 * in_channel * ksize * ksize
    bound = 1.0 / (fan_in ** 0.5)
    weight = jax.random.uniform(
        kw, (out_channel, 2 * in_channel, ksize, ksize),
        dtype=jnp.float32, minval=-bound, maxval=bound)
    bias = jax.random.uniform(
        kb, (out_channel,), dtype=jnp.float32, minval=-bound, maxval=bound)
    x = jax.random.normal(kx, (B, in_channel, N), dtype=jnp.float32)

    y = knn_feature_forward(x, weight, bias, k=nb_neighbors, ksize=ksize)
    y = jax.block_until_ready(y)
    assert y.shape == (B, out_channel, N - ksize + 1), y.shape
    assert y.dtype == jnp.float32
    assert bool(jnp.all(jnp.isfinite(y)))

    # --- correctness checks against a plain-JAX reference ---
    idx_bkn = knn_indices(x, k=nb_neighbors)                             # (B, k, N)
    idx_bnk = jnp.transpose(idx_bkn, (0, 2, 1))                          # (B, N, k)
    gram = jnp.einsum("bci,bcj->bij", x, x)
    sq = jnp.sum(x * x, axis=1, keepdims=True)                           # (B, 1, N)
    dist = 2.0 * gram - jnp.transpose(sq, (0, 2, 1)) - sq
    _, idx_topk = jax.lax.top_k(dist, nb_neighbors)
    assert bool(jnp.array_equal(jnp.sort(idx_bnk, axis=-1),
                                jnp.sort(idx_topk.astype(jnp.int32), axis=-1)))

    ref = _reference_forward(x, weight, bias, idx_bnk)                   # uses kernel idx
    err = float(jnp.max(jnp.abs(y - ref)))
    assert err < 1e-3, err

    print("KERNEL_OK")
</pallas_src>

<mosaic_0001>
module attributes {stable_mosaic.version = 11 : i64} {
  func.func @_knn_topk_kernel(%arg0: i32, %arg1: i32, %arg2: memref<1x5x16xf32, #tpu.memory_space<vmem>>, %arg3: memref<1x5x16xf32, #tpu.memory_space<vmem>>, %arg4: memref<1x10x16xi32, #tpu.memory_space<vmem>>, %arg5: memref<16x16xf32, #tpu.memory_space<vmem>>) attributes {dimension_semantics = [#tpu.dimension_semantics<parallel>, #tpu.dimension_semantics<parallel>], iteration_bounds = array<i64: 2, 1>, scalar_prefetch = 0 : i64, scratch_operands = 1 : i64, tpu.core_type = #tpu.core_type<tc>, window_params = [{transform_indices = @transform_0, window_bounds = array<i64: 1, 5, 16>}, {transform_indices = @transform_1, window_bounds = array<i64: 1, 5, 16>}, {transform_indices = @transform_2, window_bounds = array<i64: 1, 10, 16>}]} {
    %c0 = arith.constant 0 : index
    %c0_0 = arith.constant 0 : index
    %c0_1 = arith.constant 0 : index
    %0 = vector.load %arg2[%c0, %c0_0, %c0_1] : memref<1x5x16xf32, #tpu.memory_space<vmem>>, vector<1x5x16xf32>
    %1 = vector.shape_cast %0 : vector<1x5x16xf32> to vector<5x16xf32>
    %c0_2 = arith.constant 0 : index
    %c0_3 = arith.constant 0 : index
    %c0_4 = arith.constant 0 : index
    %2 = vector.load %arg3[%c0_2, %c0_3, %c0_4] : memref<1x5x16xf32, #tpu.memory_space<vmem>>, vector<1x5x16xf32>
    %3 = vector.shape_cast %2 : vector<1x5x16xf32> to vector<5x16xf32>
    %cst = arith.constant dense<0.000000e+00> : vector<16x16xf32>
    %4 = tpu.matmul %1, %3, %cst {dimension_numbers = #tpu.dot_dimension_numbers<[0], [0], [1], [1], [0, 1, 1, 1], [], []>} : vector<5x16xf32>, vector<5x16xf32>, vector<16x16xf32> -> vector<16x16xf32>
    %c0_5 = arith.constant 0 : index
    %c0_6 = arith.constant 0 : index
    %5 = vector.load %arg5[%c0_5, %c0_6] : memref<16x16xf32, #tpu.memory_space<vmem>>, vector<16x16xf32>
    tpu.vector_store %arg5[%c0_5, %c0_6], %4 {strides = array<i32>} : memref<16x16xf32, #tpu.memory_space<vmem>>, vector<16x16xf32>,
    %6 = tpu.iota {dimensions = array<i32: 0>} : vector<16x16xi32>
    %7 = arith.sitofp %6 : vector<16x16xi32> to vector<16x16xf32>
    %c0_7 = arith.constant 0 : index
    %c0_8 = arith.constant 0 : index
    %8 = vector.load %arg5[%c0_7, %c0_8] : memref<16x16xf32, #tpu.memory_space<vmem>>, vector<16x16xf32>
    %cst_9 = arith.constant dense<0xFF800000> : vector<16xf32>
    %9 = vector.multi_reduction <maximumf>, %8, %cst_9 [0] : vector<16x16xf32> to vector<16xf32>
    %10 = vector.shape_cast %9 : vector<16xf32> to vector<1x16xf32>
    %11 = vector.broadcast %10 : vector<1x16xf32> to vector<16x16xf32>
    %12 = arith.cmpf oge, %8, %11 : vector<16x16xf32>
    %cst_10 = arith.constant 1.600000e+01 : f32
    %13 = vector.broadcast %cst_10 : f32 to vector<16x16xf32>
    %14 = arith.select %12, %7, %13 : vector<16x16xi1>, vector<16x16xf32>
    %cst_11 = arith.constant dense<0x7F800000> : vector<16xf32>
    %15 = vector.multi_reduction <minimumf>, %14, %cst_11 [0] : vector<16x16xf32> to vector<16xf32>
    %16 = vector.shape_cast %15 : vector<16xf32> to vector<1x16xf32>
    %17 = vector.broadcast %16 : vector<1x16xf32> to vector<16x16xf32>
    %18 = arith.cmpf oeq, %7, %17 : vector<16x16xf32>
    %cst_12 = arith.constant -3.000000e+38 : f32
    %19 = vector.broadcast %cst_12 : f32 to vector<16x16xf32>
    %20 = arith.select %18, %19, %8 : vector<16x16xi1>, vector<16x16xf32>
    %c0_13 = arith.constant 0 : index
    %c0_14 = arith.constant 0 : index
    %21 = vector.load %arg5[%c0_13, %c0_14] : memref<16x16xf32, #tpu.memory_space<vmem>>, vector<16x16xf32>
    tpu.vector_store %arg5[%c0_13, %c0_14], %20 {strides = array<i32>} : memref<16x16xf32, #tpu.memory_space<vmem>>, vector<16x16xf32>,
    %c0_15 = arith.constant 0 : index
    %c0_16 = arith.constant 0 : index
    %22 = vector.load %arg5[%c0_15, %c0_16] : memref<16x16xf32, #tpu.memory_space<vmem>>, vector<16x16xf32>
    %cst_17 = arith.constant dense<0xFF800000> : vector<16xf32>
    %23 = vector.multi_reduction <maximumf>, %22, %cst_17 [0] : vector<16x16xf32> to vector<16xf32>
    %24 = vector.shape_cast %23 : vector<16xf32> to vector<1x16xf32>
    %25 = vector.broadcast %24 : vector<1x16xf32> to vector<16x16xf32>
    %26 = arith.cmpf oge, %22, %25 : vector<16x16xf32>
    %cst_18 = arith.constant 1.600000e+01 : f32
    %27 = vector.broadcast %cst_18 : f32 to vector<16x16xf32>
    %28 = arith.select %26, %7, %27 : vector<16x16xi1>, vector<16x16xf32>
    %cst_19 = arith.constant dense<0x7F800000> : vector<16xf32>
    %29 = vector.multi_reduction <minimumf>, %28, %cst_19 [0] : vector<16x16xf32> to vector<16xf32>
    %30 = vector.shape_cast %29 : vector<16xf32> to vector<1x16xf32>
    %31 = vector.broadcast %30 : vector<1x16xf32> to vector<16x16xf32>
    %32 = arith.cmpf oeq, %7, %31 : vector<16x16xf32>
    %cst_20 = arith.constant -3.000000e+38 : f32
    %33 = vector.broadcast %cst_20 : f32 to vector<16x16xf32>
    %34 = arith.select %32, %33, %22 : vector<16x16xi1>, vector<16x16xf32>
    %c0_21 = arith.constant 0 : index
    %c0_22 = arith.constant 0 : index
    %35 = vector.load %arg5[%c0_21, %c0_22] : memref<16x16xf32, #tpu.memory_space<vmem>>, vector<16x16xf32>
    tpu.vector_store %arg5[%c0_21, %c0_22], %34 {strides = array<i32>} : memref<16x16xf32, #tpu.memory_space<vmem>>, vector<16x16xf32>,
    %c0_23 = arith.constant 0 : index
    %c0_24 = arith.constant 0 : index
    %36 = vector.load %arg5[%c0_23, %c0_24] : memref<16x16xf32, #tpu.memory_space<vmem>>, vector<16x16xf32>
    %cst_25 = arith.constant dense<0xFF800000> : vector<16xf32>
    %37 = vector.multi_reduction <maximumf>, %36, %cst_25 [0] : vector<16x16xf32> to vector<16xf32>
    %38 = vector.shape_cast %37 : vector<16xf32> to vector<1x16xf32>
    %39 = vector.broadcast %38 : vector<1x16xf32> to vector<16x16xf32>
    %40 = arith.cmpf oge, %36, %39 : vector<16x16xf32>
    %cst_26 = arith.constant 1.600000e+01 : f32
    %41 = vector.broadcast %cst_26 : f32 to vector<16x16xf32>
    %42 = arith.select %40, %7, %41 : vector<16x16xi1>, vector<16x16xf32>
    %cst_27 = arith.constant dense<0x7F800000> : vector<16xf32>
    %43 = vector.multi_reduction <minimumf>, %42, %cst_27 [0] : vector<16x16xf32> to vector<16xf32>
    %44 = vector.shape_cast %43 : vector<16xf32> to vector<1x16xf32>
    %45 = vector.broadcast %44 : vector<1x16xf32> to vector<16x16xf32>
    %46 = arith.cmpf oeq, %7, %45 : vector<16x16xf32>
    %cst_28 = arith.constant -3.000000e+38 : f32
    %47 = vector.broadcast %cst_28 : f32 to vector<16x16xf32>
    %48 = arith.select %46, %47, %36 : vector<16x16xi1>, vector<16x16xf32>
    %c0_29 = arith.constant 0 : index
    %c0_30 = arith.constant 0 : index
    %49 = vector.load %arg5[%c0_29, %c0_30] : memref<16x16xf32, #tpu.memory_space<vmem>>, vector<16x16xf32>
    tpu.vector_store %arg5[%c0_29, %c0_30], %48 {strides = array<i32>} : memref<16x16xf32, #tpu.memory_space<vmem>>, vector<16x16xf32>,
    %c0_31 = arith.constant 0 : index
    %c0_32 = arith.constant 0 : index
    %50 = vector.load %arg5[%c0_31, %c0_32] : memref<16x16xf32, #tpu.memory_space<vmem>>, vector<16x16xf32>
    %cst_33 = arith.constant dense<0xFF800000> : vector<16xf32>
    %51 = vector.multi_reduction <maximumf>, %50, %cst_33 [0] : vector<16x16xf32> to vector<16xf32>
    %52 = vector.shape_cast %51 : vector<16xf32> to vector<1x16xf32>
    %53 = vector.broadcast %52 : vector<1x16xf32> to vector<16x16xf32>
    %54 = arith.cmpf oge, %50, %53 : vector<16x16xf32>
    %cst_34 = arith.constant 1.600000e+01 : f32
    %55 = vector.broadcast %cst_34 : f32 to vector<16x16xf32>
    %56 = arith.select %54, %7, %55 : vector<16x16xi1>, vector<16x16xf32>
    %cst_35 = arith.constant dense<0x7F800000> : vector<16xf32>
    %57 = vector.multi_reduction <minimumf>, %56, %cst_35 [0] : vector<16x16xf32> to vector<16xf32>
    %58 = vector.shape_cast %57 : vector<16xf32> to vector<1x16xf32>
    %59 = vector.broadcast %58 : vector<1x16xf32> to vector<16x16xf32>
    %60 = arith.cmpf oeq, %7, %59 : vector<16x16xf32>
    %cst_36 = arith.constant -3.000000e+38 : f32
    %61 = vector.broadcast %cst_36 : f32 to vector<16x16xf32>
    %62 = arith.select %60, %61, %50 : vector<16x16xi1>, vector<16x16xf32>
    %c0_37 = arith.constant 0 : index
    %c0_38 = arith.constant 0 : index
    %63 = vector.load %arg5[%c0_37, %c0_38] : memref<16x16xf32, #tpu.memory_space<vmem>>, vector<16x16xf32>
    tpu.vector_store %arg5[%c0_37, %c0_38], %62 {strides = array<i32>} : memref<16x16xf32, #tpu.memory_space<vmem>>, vector<16x16xf32>,
    %c0_39 = arith.constant 0 : index
    %c0_40 = arith.constant 0 : index
    %64 = vector.load %arg5[%c0_39, %c0_40] : memref<16x16xf32, #tpu.memory_space<vmem>>, vector<16x16xf32>
    %cst_41 = arith.constant dense<0xFF800000> : vector<16xf32>
    %65 = vector.multi_reduction <maximumf>, %64, %cst_41 [0] : vector<16x16xf32> to vector<16xf32>
    %66 = vector.shape_cast %65 : vector<16xf32> to vector<1x16xf32>
    %67 = vector.broadcast %66 : vector<1x16xf32> to vector<16x16xf32>
    %68 = arith.cmpf oge, %64, %67 : vector<16x16xf32>
    %cst_42 = arith.constant 1.600000e+01 : f32
    %69 = vector.broadcast %cst_42 : f32 to vector<16x16xf32>
    %70 = arith.select %68, %7, %69 : vector<16x16xi1>, vector<16x16xf32>
    %cst_43 = arith.constant dense<0x7F800000> : vector<16xf32>
    %71 = vector.multi_reduction <minimumf>, %70, %cst_43 [0] : vector<16x16xf32> to vector<16xf32>
    %72 = vector.shape_cast %71 : vector<16xf32> to vector<1x16xf32>
    %73 = vector.broadcast %72 : vector<1x16xf32> to vector<16x16xf32>
    %74 = arith.cmpf oeq, %7, %73 : vector<16x16xf32>
    %cst_44 = arith.constant -3.000000e+38 : f32
    %75 = vector.broadcast %cst_44 : f32 to vector<16x16xf32>
    %76 = arith.select %74, %75, %64 : vector<16x16xi1>, vector<16x16xf32>
    %c0_45 = arith.constant 0 : index
    %c0_46 = arith.constant 0 : index
    %77 = vector.load %arg5[%c0_45, %c0_46] : memref<16x16xf32, #tpu.memory_space<vmem>>, vector<16x16xf32>
    tpu.vector_store %arg5[%c0_45, %c0_46], %76 {strides = array<i32>} : memref<16x16xf32, #tpu.memory_space<vmem>>, vector<16x16xf32>,
    %c0_47 = arith.constant 0 : index
    %c0_48 = arith.constant 0 : index
    %78 = vector.load %arg5[%c0_47, %c0_48] : memref<16x16xf32, #tpu.memory_space<vmem>>, vector<16x16xf32>
    %cst_49 = arith.constant dense<0xFF800000> : vector<16xf32>
    %79 = vector.multi_reduction <maximumf>, %78, %cst_49 [0] : vector<16x16xf32> to vector<16xf32>
    %80 = vector.shape_cast %79 : vector<16xf32> to vector<1x16xf32>
    %81 = vector.broadcast %80 : vector<1x16xf32> to vector<16x16xf32>
    %82 = arith.cmpf oge, %78, %81 : vector<16x16xf32>
    %cst_50 = arith.constant 1.600000e+01 : f32
    %83 = vector.broadcast %cst_50 : f32 to vector<16x16xf32>
    %84 = arith.select %82, %7, %83 : vector<16x16xi1>, vector<16x16xf32>
    %cst_51 = arith.constant dense<0x7F800000> : vector<16xf32>
    %85 = vector.multi_reduction <minimumf>, %84, %cst_51 [0] : vector<16x16xf32> to vector<16xf32>
    %86 = vector.shape_cast %85 : vector<16xf32> to vector<1x16xf32>
    %87 = vector.broadcast %86 : vector<1x16xf32> to vector<16x16xf32>
    %88 = arith.cmpf oeq, %7, %87 : vector<16x16xf32>
    %cst_52 = arith.constant -3.000000e+38 : f32
    %89 = vector.broadcast %cst_52 : f32 to vector<16x16xf32>
    %90 = arith.select %88, %89, %78 : vector<16x16xi1>, vector<16x16xf32>
    %c0_53 = arith.constant 0 : index
    %c0_54 = arith.constant 0 : index
    %91 = vector.load %arg5[%c0_53, %c0_54] : memref<16x16xf32, #tpu.memory_space<vmem>>, vector<16x16xf32>
    tpu.vector_store %arg5[%c0_53, %c0_54], %90 {strides = array<i32>} : memref<16x16xf32, #tpu.memory_space<vmem>>, vector<16x16xf32>,
    %c0_55 = arith.constant 0 : index
    %c0_56 = arith.constant 0 : index
    %92 = vector.load %arg5[%c0_55, %c0_56] : memref<16x16xf32, #tpu.memory_space<vmem>>, vector<16x16xf32>
    %cst_57 = arith.constant dense<0xFF800000> : vector<16xf32>
    %93 = vector.multi_reduction <maximumf>, %92, %cst_57 [0] : vector<16x16xf32> to vector<16xf32>
    %94 = vector.shape_cast %93 : vector<16xf32> to vector<1x16xf32>
    %95 = vector.broadcast %94 : vector<1x16xf32> to vector<16x16xf32>
    %96 = arith.cmpf oge, %92, %95 : vector<16x16xf32>
    %cst_58 = arith.constant 1.600000e+01 : f32
    %97 = vector.broadcast %cst_58 : f32 to vector<16x16xf32>
    %98 = arith.select %96, %7, %97 : vector<16x16xi1>, vector<16x16xf32>
    %cst_59 = arith.constant dense<0x7F800000> : vector<16xf32>
    %99 = vector.multi_reduction <minimumf>, %98, %cst_59 [0] : vector<16x16xf32> to vector<16xf32>
    %100 = vector.shape_cast %99 : vector<16xf32> to vector<1x16xf32>
    %101 = vector.broadcast %100 : vector<1x16xf32> to vector<16x16xf32>
    %102 = arith.cmpf oeq, %7, %101 : vector<16x16xf32>
    %cst_60 = arith.constant -3.000000e+38 : f32
    %103 = vector.broadcast %cst_60 : f32 to vector<16x16xf32>
    %104 = arith.select %102, %103, %92 : vector<16x16xi1>, vector<16x16xf32>
    %c0_61 = arith.constant 0 : index
    %c0_62 = arith.constant 0 : index
    %105 = vector.load %arg5[%c0_61, %c0_62] : memref<16x16xf32, #tpu.memory_space<vmem>>, vector<16x16xf32>
    tpu.vector_store %arg5[%c0_61, %c0_62], %104 {strides = array<i32>} : memref<16x16xf32, #tpu.memory_space<vmem>>, vector<16x16xf32>,
    %c0_63 = arith.constant 0 : index
    %c0_64 = arith.constant 0 : index
    %106 = vector.load %arg5[%c0_63, %c0_64] : memref<16x16xf32, #tpu.memory_space<vmem>>, vector<16x16xf32>
    %cst_65 = arith.constant dense<0xFF800000> : vector<16xf32>
    %107 = vector.multi_reduction <maximumf>, %106, %cst_65 [0] : vector<16x16xf32> to vector<16xf32>
    %108 = vector.shape_cast %107 : vector<16xf32> to vector<1x16xf32>
    %109 = vector.broadcast %108 : vector<1x16xf32> to vector<16x16xf32>
    %110 = arith.cmpf oge, %106, %109 : vector<16x16xf32>
    %cst_66 = arith.constant 1.600000e+01 : f32
    %111 = vector.broadcast %cst_66 : f32 to vector<16x16xf32>
    %112 = arith.select %110, %7, %111 : vector<16x16xi1>, vector<16x16xf32>
    %cst_67 = arith.constant dense<0x7F800000> : vector<16xf32>
    %113 = vector.multi_reduction <minimumf>, %112, %cst_67 [0] : vector<16x16xf32> to vector<16xf32>
    %114 = vector.shape_cast %113 : vector<16xf32> to vector<1x16xf32>
    %115 = vector.broadcast %114 : vector<1x16xf32> to vector<16x16xf32>
    %116 = arith.cmpf oeq, %7, %115 : vector<16x16xf32>
    %cst_68 = arith.constant -3.000000e+38 : f32
    %117 = vector.broadcast %cst_68 : f32 to vector<16x16xf32>
    %118 = arith.select %116, %117, %106 : vector<16x16xi1>, vector<16x16xf32>
    %c0_69 = arith.constant 0 : index
    %c0_70 = arith.constant 0 : index
    %119 = vector.load %arg5[%c0_69, %c0_70] : memref<16x16xf32, #tpu.memory_space<vmem>>, vector<16x16xf32>
    tpu.vector_store %arg5[%c0_69, %c0_70], %118 {strides = array<i32>} : memref<16x16xf32, #tpu.memory_space<vmem>>, vector<16x16xf32>,
    %c0_71 = arith.constant 0 : index
    %c0_72 = arith.constant 0 : index
    %120 = vector.load %arg5[%c0_71, %c0_72] : memref<16x16xf32, #tpu.memory_space<vmem>>, vector<16x16xf32>
    %cst_73 = arith.constant dense<0xFF800000> : vector<16xf32>
    %121 = vector.multi_reduction <maximumf>, %120, %cst_73 [0] : vector<16x16xf32> to vector<16xf32>
    %122 = vector.shape_cast %121 : vector<16xf32> to vector<1x16xf32>
    %123 = vector.broadcast %122 : vector<1x16xf32> to vector<16x16xf32>
    %124 = arith.cmpf oge, %120, %123 : vector<16x16xf32>
    %cst_74 = arith.constant 1.600000e+01 : f32
    %125 = vector.broadcast %cst_74 : f32 to vector<16x16xf32>
    %126 = arith.select %124, %7, %125 : vector<16x16xi1>, vector<16x16xf32>
    %cst_75 = arith.constant dense<0x7F800000> : vector<16xf32>
    %127 = vector.multi_reduction <minimumf>, %126, %cst_75 [0] : vector<16x16xf32> to vector<16xf32>
    %128 = vector.shape_cast %127 : vector<16xf32> to vector<1x16xf32>
    %129 = vector.broadcast %128 : vector<1x16xf32> to vector<16x16xf32>
    %130 = arith.cmpf oeq, %7, %129 : vector<16x16xf32>
    %cst_76 = arith.constant -3.000000e+38 : f32
    %131 = vector.broadcast %cst_76 : f32 to vector<16x16xf32>
    %132 = arith.select %130, %131, %120 : vector<16x16xi1>, vector<16x16xf32>
    %c0_77 = arith.constant 0 : index
    %c0_78 = arith.constant 0 : index
    %133 = vector.load %arg5[%c0_77, %c0_78] : memref<16x16xf32, #tpu.memory_space<vmem>>, vector<16x16xf32>
    tpu.vector_store %arg5[%c0_77, %c0_78], %132 {strides = array<i32>} : memref<16x16xf32, #tpu.memory_space<vmem>>, vector<16x16xf32>,
    %c0_79 = arith.constant 0 : index
    %c0_80 = arith.constant 0 : index
    %134 = vector.load %arg5[%c0_79, %c0_80] : memref<16x16xf32, #tpu.memory_space<vmem>>, vector<16x16xf32>
    %cst_81 = arith.constant dense<0xFF800000> : vector<16xf32>
    %135 = vector.multi_reduction <maximumf>, %134, %cst_81 [0] : vector<16x16xf32> to vector<16xf32>
    %136 = vector.shape_cast %135 : vector<16xf32> to vector<1x16xf32>
    %137 = vector.broadcast %136 : vector<1x16xf32> to vector<16x16xf32>
    %138 = arith.cmpf oge, %134, %137 : vector<16x16xf32>
    %cst_82 = arith.constant 1.600000e+01 : f32
    %139 = vector.broadcast %cst_82 : f32 to vector<16x16xf32>
    %140 = arith.select %138, %7, %139 : vector<16x16xi1>, vector<16x16xf32>
    %cst_83 = arith.constant dense<0x7F800000> : vector<16xf32>
    %141 = vector.multi_reduction <minimumf>, %140, %cst_83 [0] : vector<16x16xf32> to vector<16xf32>
    %142 = vector.shape_cast %141 : vector<16xf32> to vector<1x16xf32>
    %143 = vector.broadcast %142 : vector<1x16xf32> to vector<16x16xf32>
    %144 = arith.cmpf oeq, %7, %143 : vector<16x16xf32>
    %cst_84 = arith.constant -3.000000e+38 : f32
    %145 = vector.broadcast %cst_84 : f32 to vector<16x16xf32>
    %146 = arith.select %144, %145, %134 : vector<16x16xi1>, vector<16x16xf32>
    %c0_85 = arith.constant 0 : index
    %c0_86 = arith.constant 0 : index
    %147 = vector.load %arg5[%c0_85, %c0_86] : memref<16x16xf32, #tpu.memory_space<vmem>>, vector<16x16xf32>
    tpu.vector_store %arg5[%c0_85, %c0_86], %146 {strides = array<i32>} : memref<16x16xf32, #tpu.memory_space<vmem>>, vector<16x16xf32>,
    %148 = tpu.concatenate %16, %30, %44, %58, %72, %86, %100, %114, %128, %142 in 0 : vector<1x16xf32>, vector<1x16xf32>, vector<1x16xf32>, vector<1x16xf32>, vector<1x16xf32>, vector<1x16xf32>, vector<1x16xf32>, vector<1x16xf32>, vector<1x16xf32>, vector<1x16xf32> -> vector<10x16xf32>
    %149 = arith.fptosi %148 : vector<10x16xf32> to vector<10x16xi32>
    %c0_87 = arith.constant 0 : index
    %c0_88 = arith.constant 0 : index
    %c0_89 = arith.constant 0 : index
    %150 = vector.load %arg4[%c0_87, %c0_88, %c0_89] : memref<1x10x16xi32, #tpu.memory_space<vmem>>, vector<1x10x16xi32>
    %151 = vector.shape_cast %150 : vector<1x10x16xi32> to vector<10x16xi32>
    %152 = vector.shape_cast %149 : vector<10x16xi32> to vector<1x10x16xi32>
    tpu.vector_store %arg4[%c0_87, %c0_88, %c0_89], %152 {strides = array<i32>} : memref<1x10x16xi32, #tpu.memory_space<vmem>>, vector<1x10x16xi32>,
    return
  }
  func.func @transform_0(%arg0: i32, %arg1: i32) -> (i32, i32, i32) {
    %c0_i32 = arith.constant 0 : i32
    %c0_i32_0 = arith.constant 0 : i32
    %c0_i32_1 = arith.constant 0 : i32
    return %arg0, %c0_i32, %c0_i32_0 : i32, i32, i32
  }
  func.func @transform_1(%arg0: i32, %arg1: i32) -> (i32, i32, i32) {
    %c0_i32 = arith.constant 0 : i32
    %c0_i32_0 = arith.constant 0 : i32
    return %arg0, %c0_i32, %arg1 : i32, i32, i32
  }
  func.func @transform_2(%arg0: i32, %arg1: i32) -> (i32, i32, i32) {
    %c0_i32 = arith.constant 0 : i32
    %c0_i32_0 = arith.constant 0 : i32
    return %arg0, %c0_i32, %arg1 : i32, i32, i32
  }
}

</mosaic_0001>

<llo_original>
// kernel: neg.9
$region0: #{neg.9}
  #allocation0 [shape = 's32[1]{0}', space=sflag, size = 0x4, scoped, tag = 'scoped memory for neg.9']
  %s0 = inlined_call_operand.vmem [shape: f32[2,16], index: 0, kind: input, shape index: {}]
  %s1 = inlined_call_operand.vmem [shape: f32[2,16], index: 1, kind: output, shape index: {}]
  %v2 = vld [vmem:[%s0] sm:$0x3]
  %3 = xla_tuple %v2
  %4 = xla_tuple %3
  %v5 = vxor.u32 %v2, 2147483648
  %6 = xla_tuple %v5
  %7 = vst [vmem:[%s1] sm:$0x3] %v5

// kernel: knn_indices.1
$region0: #{knn_indices.1}
  #allocation0 [shape = 'u32[]', space=smem, size = 0x4, offset = 0x4, fixed_abs, tag = 'smem constant byte address 0x4 - core index']
  #allocation1 [shape = 'u32[144,128]{1,0:T(1,128)}', space=vmem, size = 0x12000, scoped, tag = 'internal scratch']
  #allocation2 [shape = 'f32[16,16]{1,0:T(8,128)}', space=vmem, size = 0x2000, scoped, tag = 'scratch operand']
  %s0 = inlined_call_operand.vmem [shape: f32[2,5,16], index: 0, kind: input, shape index: {}]
  %s1 = inlined_call_operand.vmem [shape: f32[2,5,16], index: 1, kind: input, shape index: {}]
  %s2 = inlined_call_operand.vmem [shape: s32[2,10,16], index: 2, kind: output, shape index: {}]
  %s3 = sld [smem:[#allocation0]]
  $region41: #{knn_indices.1} parent=0
    _
  %s5 = ssub.s32 1, %s3
  %s6 = scalar_select 0, %s5, %s3
  loop: start=0, step=1, limit=4
  $region2: #{knn_indices.1} parent=0 // loop_pre_header
    _
  $region3: #{knn_indices.1} parent=0 // loop_header
    %s8 = sphi 0, %s12
    %p9 = scmp.ge.s32.totalorder %s8, 4
    %s15 = sphi 0, %s27
    %s16 = sphi 0, %s23
    %s17 = sphi 0, %s15
    %s18 = sphi 0, %s16
    %s19 = sphi 0, %s17
    %s20 = sphi 0, %s18
    %s30 = sphi 0, %s32
    %s33 = sphi 0, %s30
    %s34 = sphi 0, %s33
    %s50 = sphi 0, %s34
    %s58 = sphi 0, %s60
    %s61 = sphi 0, %s58
    %s62 = sphi 0, %s61
    %s78 = sphi 0, %s62
    %s86 = sphi 0, %s88
    %s89 = sphi 0, %s86
    %s90 = sphi 0, %s89
    %s106 = sphi 0, %s90
  $region4: #{knn_indices.1} parent=0 // loop_header_branch
    %11 = sbr.rel (%p9) target = $region8
  $region5: #{knn_indices.1} parent=0 // loop_body
    %s13 = ssub.s32 %s8, 1
    %s14 = ssub.s32 %s8, 2
    %s21 = sadd.s32 1, %s16
    %p22 = scmp.ge.s32.totalorder %s21, 1
    %s23 = scalar_select %p22, 0, %s21
    %s24 = sadd.s32 1, %s15
    %s25 = scalar_select %p22, %s24, %s15
    %p26 = scmp.ge.s32.totalorder %s25, 2
    %s27 = scalar_select %p26, 0, %s25
    %s28 = ssub.s32 %s15, %s27
    %p29 = scmp.eq.s32.totalorder %s28, 0
    %s31 = sadd.s32 %s30, 1
    %s32 = scalar_select %p29, %s30, %s31
    %p35 = pneg %p29
    %p36 = scmp.eq.s32.totalorder %s8, 1
    %p37 = por %p35, %p36
    %p38 = scmp.ne.s32.totalorder %s30, %s33
    %p39 = scmp.eq.s32.totalorder %s8, 0
    %p40 = por %p38, %p39
    %p41 = scmp.ne.s32.totalorder %s30, %s33
    %p42 = scmp.eq.s32.totalorder %s13, 1
    %p43 = por %p41, %p42
    %p44 = scmp.ne.s32.totalorder %s33, %s34
    %p45 = scmp.eq.s32.totalorder %s13, 0
    %p46 = por %p44, %p45
    %p47 = scmp.ne.s32.totalorder %s33, %s34
    %p48 = scmp.eq.s32.totalorder %s14, 1
    %p49 = por %p47, %p48
    %p51 = scmp.ne.s32.totalorder %s34, %s50
    %p52 = scmp.eq.s32.totalorder %s14, 0
    %p53 = por %p51, %p52
    %s54 = ssub.s32 %s15, %s27
    %s55 = ssub.s32 %s16, %s23
    %s56 = sor.u32 %s54, %s55
    %p57 = scmp.eq.s32.totalorder %s56, 0
    %s59 = sadd.s32 %s58, 1
    %s60 = scalar_select %p57, %s58, %s59
    %p63 = pneg %p57
    %p64 = scmp.eq.s32.totalorder %s8, 1
    %p65 = por %p63, %p64
    %p66 = scmp.ne.s32.totalorder %s58, %s61
    %p67 = scmp.eq.s32.totalorder %s8, 0
    %p68 = por %p66, %p67
    %p69 = scmp.ne.s32.totalorder %s58, %s61
    %p70 = scmp.eq.s32.totalorder %s13, 1
    %p71 = por %p69, %p70
    %p72 = scmp.ne.s32.totalorder %s61, %s62
    %p73 = scmp.eq.s32.totalorder %s13, 0
    %p74 = por %p72, %p73
    %p75 = scmp.ne.s32.totalorder %s61, %s62
    %p76 = scmp.eq.s32.totalorder %s14, 1
    %p77 = por %p75, %p76
    %p79 = scmp.ne.s32.totalorder %s62, %s78
    %p80 = scmp.eq.s32.totalorder %s14, 0
    %p81 = por %p79, %p80
    %s82 = ssub.s32 %s15, %s27
    %s83 = ssub.s32 %s16, %s23
    %s84 = sor.u32 %s82, %s83
    %p85 = scmp.eq.s32.totalorder %s84, 0
    %s87 = sadd.s32 %s86, 1
    %s88 = scalar_select %p85, %s86, %s87
    %p91 = pneg %p85
    %p92 = scmp.eq.s32.totalorder %s8, 1
    %p93 = por %p91, %p92
    %p94 = scmp.ne.s32.totalorder %s86, %s89
    %p95 = scmp.eq.s32.totalorder %s8, 0
    %p96 = por %p94, %p95
    %p97 = scmp.ne.s32.totalorder %s86, %s89
    %p98 = scmp.eq.s32.totalorder %s13, 1
    %p99 = por %p97, %p98
    %p100 = scmp.ne.s32.totalorder %s89, %s90
    %p101 = scmp.eq.s32.totalorder %s13, 0
    %p102 = por %p100, %p101
    %p103 = scmp.ne.s32.totalorder %s89, %s90
    %p104 = scmp.eq.s32.totalorder %s14, 1
    %p105 = por %p103, %p104
    %p107 = scmp.ne.s32.totalorder %s90, %s106
    %p108 = scmp.eq.s32.totalorder %s14, 0
    %p109 = por %p107, %p108
    %p110 = scmp.le.s32.totalorder 1, %s8
    %p111 = scmp.lt.s32.totalorder %s8, 3
    %p112 = pnand %p110, %p111
    %p113 = pneg %p112
    // Predicated region
    $region9: #{knn_indices.1} parent=5 // pred_check
      _
    $region10: #{knn_indices.1} parent=5 // pred_check_branch
      %115 = sbr.rel (%p112) target = $region12
    $region11: #{knn_indices.1} parent=5 // pred_region
      %s116 = ssub.s32 %s8, 1
    $region12: #{knn_indices.1} parent=5 // pred_fallthru
      _
    %p117 = scmp.lt.s32.totalorder %s8, 2
    // Predicated region
    $region13: #{knn_indices.1} parent=5 // pred_check
      %p118 = pneg %p117
    $region14: #{knn_indices.1} parent=5 // pred_check_branch
      %120 = sbr.rel (%p118) target = $region16
    $region15: #{knn_indices.1} parent=5 // pred_region
      // Predicated region
      $region17: #{knn_indices.1} parent=15 // pred_check
        %p121 = pneg %p40
      $region18: #{knn_indices.1} parent=15 // pred_check_branch
        %123 = sbr.rel (%p121) target = $region20
      $region19: #{knn_indices.1} parent=15 // pred_region
        %p124 = scmp.lt.s32.totalorder %s15, 1
        %s125 = scalar_select %p124, %s15, 1
        %s126 = smul.addr %s125, 8
        %s127 = scalar_lea.vmem %s0, %s126
      $region20: #{knn_indices.1} parent=15 // pred_fallthru
        _
      // Predicated region
      $region21: #{knn_indices.1} parent=15 // pred_check
        %p128 = pneg %p68
      $region22: #{knn_indices.1} parent=15 // pred_check_branch
        %130 = sbr.rel (%p128) target = $region24
      $region23: #{knn_indices.1} parent=15 // pred_region
        %p131 = scmp.lt.s32.totalorder %s15, 1
        %s132 = scalar_select %p131, %s15, 1
        %p133 = scmp.lt.s32.totalorder %s16, 0
        %s134 = scalar_select %p133, %s16, 0
        %s135 = sadd.s32 %s134, %s132
        %s136 = smul.addr %s135, 8
        %s137 = scalar_lea.vmem %s1, %s136
      $region24: #{knn_indices.1} parent=15 // pred_fallthru
        _
    $region16: #{knn_indices.1} parent=5 // pred_fallthru
      _
    %p138 = scmp.le.s32.totalorder 1, %s8
    %p139 = scmp.lt.s32.totalorder %s8, 3
    %p140 = pnand %p138, %p139
    %p141 = pneg %p140
    // Predicated region
    $region25: #{knn_indices.1} parent=5 // pred_check
      _
    $region26: #{knn_indices.1} parent=5 // pred_check_branch
      %143 = sbr.rel (%p140) target = $region28
    $region27: #{knn_indices.1} parent=5 // pred_region
      %s144 = ssub.s32 %s8, 1
      %p145 = scmp.lt.s32.totalorder %s17, 1
      %s146 = scalar_select %p145, %s17, 1
      %s147 = smul.addr %s146, 8
      %s148 = scalar_lea.vmem %s0, %s147
      %p149 = pneg %p46
      %p150 = pneg %p43
      %p151 = scmp.lt.s32.totalorder %s17, 1
      %s152 = scalar_select %p151, %s17, 1
      %p153 = scmp.lt.s32.totalorder %s18, 0
      %s154 = scalar_select %p153, %s18, 0
      %s155 = sadd.s32 %s154, %s152
      %s156 = smul.addr %s155, 8
      %s157 = scalar_lea.vmem %s1, %s156
      %p158 = pneg %p74
      %p159 = pneg %p71
      %p160 = pneg %p102
      %p161 = pneg %p99
      %p162 = scmp.lt.s32.totalorder %s17, 1
      %s163 = scalar_select %p162, %s17, 1
      %p164 = scmp.lt.s32.totalorder %s18, 0
      %s165 = scalar_select %p164, %s18, 0
      %s166 = smul.addr %s163, 2
      %s167 = sadd.s32 %s165, %s166
      %s168 = smul.addr %s167, 8
      %s169 = scalar_lea.vmem %s2, %s168
      %p170 = scmp.lt.s32.totalorder %s17, 1
      %s171 = scalar_select %p170, %s17, 1
      %s172 = smul.addr %s171, 8
      %s173 = scalar_lea.vmem %s0, %s172
      %p174 = scmp.lt.s32.totalorder %s17, 1
      %s175 = scalar_select %p174, %s17, 1
      %p176 = scmp.lt.s32.totalorder %s18, 0
      %s177 = scalar_select %p176, %s18, 0
      %s178 = sadd.s32 %s177, %s175
      %s179 = smul.addr %s178, 8
      %s180 = scalar_lea.vmem %s1, %s179
      %p181 = scmp.lt.s32.totalorder %s17, 1
      %s182 = scalar_select %p181, %s17, 1
      %p183 = scmp.lt.s32.totalorder %s18, 0
      %s184 = scalar_select %p183, %s18, 0
      %s185 = smul.addr %s182, 2
      %s186 = sadd.s32 %s184, %s185
      %s187 = smul.addr %s186, 8
      %s188 = scalar_lea.vmem %s2, %s187
      %v189 = vld [vmem:[%s173] sm:$0x1f]
      %v190 = vld [vmem:[%s180] sm:$0x1f]
      %191 = vxpose.xlu0.b32.start [1/16] %v189, 128
      %192 = vxpose.xlu0.b32.cont [2/16] 0.0, 128
      %193 = vxpose.xlu0.b32.cont [3/16] 0.0, 128
      %194 = vxpose.xlu0.b32.cont [4/16] 0.0, 128
      %195 = vxpose.xlu0.b32.cont [5/16] 0.0, 128
      %196 = vxpose.xlu0.b32.cont [6/16] 0.0, 128
      %197 = vxpose.xlu0.b32.cont [7/16] 0.0, 128
      %198 = vxpose.xlu0.b32.cont [8/16] 0.0, 128
      %199 = vxpose.xlu0.b32.cont [9/16] 0.0, 128
      %200 = vxpose.xlu0.b32.cont [10/16] 0.0, 128
      %201 = vxpose.xlu0.b32.cont [11/16] 0.0, 128
      %202 = vxpose.xlu0.b32.cont [12/16] 0.0, 128
      %203 = vxpose.xlu0.b32.cont [13/16] 0.0, 128
      %204 = vxpose.xlu0.b32.cont [14/16] 0.0, 128
      %205 = vxpose.xlu0.b32.cont [15/16] 0.0, 128
      %206 = vxpose.xlu0.b32.end [16/16] 0.0, 128
      %v207 = vpop.trf.xlu0
      %v208 = vpop.trf.xlu0
      %v209 = vpop.trf.xlu0
      %v210 = vpop.trf.xlu0
      %v211 = vpop.trf.xlu0
      %v212 = vpop.trf.xlu0
      %v213 = vpop.trf.xlu0
      %v214 = vpop.trf.xlu0
      %v215 = vpop.trf.xlu0
      %v216 = vpop.trf.xlu0
      %v217 = vpop.trf.xlu0
      %v218 = vpop.trf.xlu0
      %v219 = vpop.trf.xlu0
      %v220 = vpop.trf.xlu0
      %v221 = vpop.trf.xlu0
      %v222 = vpop.trf.xlu0
      %vm223 = vcmask 39936
      %v225 = vsel %vm223, %v207, 0
      %v228 = vsel %vm223, %v208, 0
      %vm230 = vcmask 1044480
      %v232 = vsel %vm230, %v190, 0
      %234 = vmatprep.subr.mxu0 0.0
      %235 = vmatpush1.msra.mxu0 0.0
      %236 = vmatprep.subr.mxu0 0.0
      %237 = vmatpush1.msra.mxu0 0.0
      %238 = vmatprep.subr.mxu0 0.0
      %239 = vmatpush1.msra.mxu0 0.0
      %240 = vmatprep.subr.mxu0 0.0
      %241 = vmatpush1.msra.mxu0 0.0
      %242 = vmatprep.subr.mxu0 0.0
      %243 = vmatpush1.msra.mxu0 0.0
      %244 = vmatprep.subr.mxu0 0.0
      %245 = vmatpush1.msra.mxu0 0.0
      %246 = vmatprep.subr.mxu0 0.0
      %247 = vmatpush1.msra.mxu0 0.0
      %248 = vmatprep.subr.mxu0 0.0
      %249 = vmatpush1.msra.mxu0 0.0
      %250 = vmatprep.subr.mxu0 0.0
      %251 = vmatpush1.msra.mxu0 0.0
      %252 = vmatprep.subr.mxu0 0.0
      %253 = vmatpush1.msra.mxu0 0.0
      %254 = vmatprep.subr.mxu0 0.0
      %255 = vmatpush1.msra.mxu0 0.0
      %256 = vmatprep.subr.mxu0 0.0
      %257 = vmatpush1.msra.mxu0 0.0
      %258 = vmatprep.subr.mxu0 0.0
      %259 = vmatpush1.msra.mxu0 0.0
      %260 = vmatprep.subr.mxu0 0.0
      %261 = vmatpush1.msra.mxu0 0.0
      %262 = vmatprep.subr.mxu0 0.0
      %263 = vmatpush1.msra.mxu0 0.0
      %264 = vmatprep.subr.mxu0 0.0
      %265 = vmatpush1.msra.mxu0 %v232
      %266 = vmatprep.subr.mxu0 0.0
      %267 = vmatpush2.msra.mxu0 0.0
      %268 = vmatprep.subr.mxu0 0.0
      %269 = vmatpush2.msra.mxu0 0.0
      %270 = vmatprep.subr.mxu0 0.0
      %271 = vmatpush2.msra.mxu0 0.0
      %272 = vmatprep.subr.mxu0 0.0
      %273 = vmatpush2.msra.mxu0 0.0
      %274 = vmatprep.subr.mxu0 0.0
      %275 = vmatpush2.msra.mxu0 0.0
      %276 = vmatprep.subr.mxu0 0.0
      %277 = vmatpush2.msra.mxu0 0.0
      %278 = vmatprep.subr.mxu0 0.0
      %279 = vmatpush2.msra.mxu0 0.0
      %280 = vmatprep.subr.mxu0 0.0
      %281 = vmatpush2.msra.mxu0 0.0
      %282 = vmatprep.subr.mxu0 0.0
      %283 = vmatpush2.msra.mxu0 0.0
      %284 = vmatprep.subr.mxu0 0.0
      %285 = vmatpush2.msra.mxu0 0.0
      %286 = vmatprep.subr.mxu0 0.0
      %287 = vmatpush2.msra.mxu0 0.0
      %288 = vmatprep.subr.mxu0 0.0
      %289 = vmatpush2.msra.mxu0 0.0
      %290 = vmatprep.subr.mxu0 0.0
      %291 = vmatpush2.msra.mxu0 0.0
      %292 = vmatprep.subr.mxu0 0.0
      %293 = vmatpush2.msra.mxu0 0.0
      %294 = vmatprep.subr.mxu0 0.0
      %295 = vmatpush2.msra.mxu0 0.0
      %296 = vmatprep.subr.mxu0 0.0
      %297 = vmatpush2.msra.mxu0 0.0
      %298 = vmatprep.mubr.f32.mxu0 0.0
      %299 = vmatmul.mubr.f32.gmra.mxu0 %v225
      %v300 = vpop.f32.mrf.mxu0
      %v301 = vadd.f32 0.0, %v300
      %v302 = vpop.f32.mrf.mxu0
      %303 = vmatprep.mubr.f32.mxu0 0.0
      %304 = vmatmul.mubr.f32.gmra.mxu0 %v228
      %v305 = vpop.f32.mrf.mxu0
      %v306 = vadd.f32 0.0, %v305
      %v307 = vpop.f32.mrf.mxu0
      %308 = vdwg.mxu0
      %vm309 = vcmask 130048
      %310 = vst.msk [vmem:[#allocation2] sm:$0xff] %vm309, %v301
      %311 = vst.msk [vmem:[#allocation2 + $0x8] sm:$0xff] %vm309, %v306
      %v312 = vlaneseq
      %v313 = vshrl.u32 %v312, 7
      %v314 = vadd.s32 %v313, 8
      %v315 = vcvt.s32.f32 %v313
      %v316 = vcvt.s32.f32 %v314
      %v317 = vld [vmem:[#allocation2] sm:$0xff]
      %v318 = vld [vmem:[#allocation2 + $0x8] sm:$0xff]
      %v319 = vsel %vm309, %v317, -inf
      %v320 = vsel %vm309, %v318, -inf
      %v321 = vmax.f32 %v319, %v320
      %v322 = vrot.slane %v321, 4
      %v323 = vmax.f32 %v321, %v322
      %v324 = vrot.slane %v323, 2
      %v325 = vmax.f32 %v323, %v324
      %v326 = vrot.slane %v325, 1
      %v327 = vmax.f32 %v325, %v326
      %vm328 = vcmp.ge.f32.partialorder %v317, %v327
      %vm329 = vcmp.ge.f32.partialorder %v318, %v327
      %v330 = vsel %vm328, %v315, 16.0
      %v331 = vsel %vm329, %v316, 16.0
      %v332 = vsel %vm309, %v330, inf
      %v333 = vsel %vm309, %v331, inf
      %v334 = vmin.f32 %v332, %v333
      %v335 = vrot.slane %v334, 4
      %v336 = vmin.f32 %v334, %v335
      %v337 = vrot.slane %v336, 2
      %v338 = vmin.f32 %v336, %v337
      %v339 = vrot.slane %v338, 1
      %v340 = vmin.f32 %v338, %v339
      %vm341 = vcmp.eq.f32.partialorder %v315, %v340
      %vm342 = vcmp.eq.f32.partialorder %v316, %v340
      %v343 = vsel %vm341, -3e+38, %v317
      %v344 = vsel %vm342, -3e+38, %v318
      %345 = vst.msk [vmem:[#allocation2] sm:$0xff] %vm309, %v343
      %346 = vst.msk [vmem:[#allocation2 + $0x8] sm:$0xff] %vm309, %v344
      %v347 = vld [vmem:[#allocation2] sm:$0xff]
      %v348 = vld [vmem:[#allocation2 + $0x8] sm:$0xff]
      %v349 = vsel %vm309, %v347, -inf
      %v350 = vsel %vm309, %v348, -inf
      %v351 = vmax.f32 %v349, %v350
      %v352 = vrot.slane %v351, 4
      %v353 = vmax.f32 %v351, %v352
      %v354 = vrot.slane %v353, 2
      %v355 = vmax.f32 %v353, %v354
      %v356 = vrot.slane %v355, 1
      %v357 = vmax.f32 %v355, %v356
      %vm358 = vcmp.ge.f32.partialorder %v347, %v357
      %vm359 = vcmp.ge.f32.partialorder %v348, %v357
      %v360 = vsel %vm358, %v315, 16.0
      %v361 = vsel %vm359, %v316, 16.0
      %v362 = vsel %vm309, %v360, inf
      %v363 = vsel %vm309, %v361, inf
      %v364 = vmin.f32 %v362, %v363
      %v365 = vrot.slane %v364, 4
      %v366 = vmin.f32 %v364, %v365
      %v367 = vrot.slane %v366, 2
      %v368 = vmin.f32 %v366, %v367
      %v369 = vrot.slane %v368, 1
      %v370 = vmin.f32 %v368, %v369
      %vm371 = vcmp.eq.f32.partialorder %v315, %v370
      %vm372 = vcmp.eq.f32.partialorder %v316, %v370
      %v373 = vsel %vm371, -3e+38, %v347
      %v374 = vsel %vm372, -3e+38, %v348
      %375 = vst.msk [vmem:[#allocation2] sm:$0xff] %vm309, %v373
      %376 = vst.msk [vmem:[#allocation2 + $0x8] sm:$0xff] %vm309, %v374
      %v377 = vld [vmem:[#allocation2] sm:$0xff]
      %v378 = vld [vmem:[#allocation2 + $0x8] sm:$0xff]
      %v379 = vsel %vm309, %v377, -inf
      %v380 = vsel %vm309, %v378, -inf
      %v381 = vmax.f32 %v379, %v380
      %v382 = vrot.slane %v381, 4
      %v383 = vmax.f32 %v381, %v382
      %v384 = vrot.slane %v383, 2
      %v385 = vmax.f32 %v383, %v384
      %v386 = vrot.slane %v385, 1
      %v387 = vmax.f32 %v385, %v386
      %vm388 = vcmp.ge.f32.partialorder %v377, %v387
      %vm389 = vcmp.ge.f32.partialorder %v378, %v387
      %v390 = vsel %vm388, %v315, 16.0
      %v391 = vsel %vm389, %v316, 16.0
      %v392 = vsel %vm309, %v390, inf
      %v393 = vsel %vm309, %v391, inf
      %v394 = vmin.f32 %v392, %v393
      %v395 = vrot.slane %v394, 4
      %v396 = vmin.f32 %v394, %v395
      %v397 = vrot.slane %v396, 2
      %v398 = vmin.f32 %v396, %v397
      %v399 = vrot.slane %v398, 1
      %v400 = vmin.f32 %v398, %v399
      %vm401 = vcmp.eq.f32.partialorder %v315, %v400
      %vm402 = vcmp.eq.f32.partialorder %v316, %v400
      %v403 = vsel %vm401, -3e+38, %v377
      %v404 = vsel %vm402, -3e+38, %v378
      %405 = vst.msk [vmem:[#allocation2] sm:$0xff] %vm309, %v403
      %406 = vst.msk [vmem:[#allocation2 + $0x8] sm:$0xff] %vm309, %v404
      %v407 = vld [vmem:[#allocation2] sm:$0xff]
      %v408 = vld [vmem:[#allocation2 + $0x8] sm:$0xff]
      %v409 = vsel %vm309, %v407, -inf
      %v410 = vsel %vm309, %v408, -inf
      %v411 = vmax.f32 %v409, %v410
      %v412 = vrot.slane %v411, 4
      %v413 = vmax.f32 %v411, %v412
      %v414 = vrot.slane %v413, 2
      %v415 = vmax.f32 %v413, %v414
      %v416 = vrot.slane %v415, 1
      %v417 = vmax.f32 %v415, %v416
      %vm418 = vcmp.ge.f32.partialorder %v407, %v417
      %vm419 = vcmp.ge.f32.partialorder %v408, %v417
      %v420 = vsel %vm418, %v315, 16.0
      %v421 = vsel %vm419, %v316, 16.0
      %v422 = vsel %vm309, %v420, inf
      %v423 = vsel %vm309, %v421, inf
      %v424 = vmin.f32 %v422, %v423
      %v425 = vrot.slane %v424, 4
      %v426 = vmin.f32 %v424, %v425
      %v427 = vrot.slane %v426, 2
      %v428 = vmin.f32 %v426, %v427
      %v429 = vrot.slane %v428, 1
      %v430 = vmin.f32 %v428, %v429
      %vm431 = vcmp.eq.f32.partialorder %v315, %v430
      %vm432 = vcmp.eq.f32.partialorder %v316, %v430
      %v433 = vsel %vm431, -3e+38, %v407
      %v434 = vsel %vm432, -3e+38, %v408
      %435 = vst.msk [vmem:[#allocation2] sm:$0xff] %vm309, %v433
      %436 = vst.msk [vmem:[#allocation2 + $0x8] sm:$0xff] %vm309, %v434
      %v437 = vld [vmem:[#allocation2] sm:$0xff]
      %v438 = vld [vmem:[#allocation2 + $0x8] sm:$0xff]
      %v439 = vsel %vm309, %v437, -inf
      %v440 = vsel %vm309, %v438, -inf
      %v441 = vmax.f32 %v439, %v440
      %v442 = vrot.slane %v441, 4
      %v443 = vmax.f32 %v441, %v442
      %v444 = vrot.slane %v443, 2
      %v445 = vmax.f32 %v443, %v444
      %v446 = vrot.slane %v445, 1
      %v447 = vmax.f32 %v445, %v446
      %vm448 = vcmp.ge.f32.partialorder %v437, %v447
      %vm449 = vcmp.ge.f32.partialorder %v438, %v447
      %v450 = vsel %vm448, %v315, 16.0
      %v451 = vsel %vm449, %v316, 16.0
      %v452 = vsel %vm309, %v450, inf
      %v453 = vsel %vm309, %v451, inf
      %v454 = vmin.f32 %v452, %v453
      %v455 = vrot.slane %v454, 4
      %v456 = vmin.f32 %v454, %v455
      %v457 = vrot.slane %v456, 2
      %v458 = vmin.f32 %v456, %v457
      %v459 = vrot.slane %v458, 1
      %v460 = vmin.f32 %v458, %v459
      %vm461 = vcmp.eq.f32.partialorder %v315, %v460
      %vm462 = vcmp.eq.f32.partialorder %v316, %v460
      %v463 = vsel %vm461, -3e+38, %v437
      %v464 = vsel %vm462, -3e+38, %v438
      %465 = vst.msk [vmem:[#allocation2] sm:$0xff] %vm309, %v463
      %466 = vst.msk [vmem:[#allocation2 + $0x8] sm:$0xff] %vm309, %v464
      %v467 = vld [vmem:[#allocation2] sm:$0xff]
      %v468 = vld [vmem:[#allocation2 + $0x8] sm:$0xff]
      %v469 = vsel %vm309, %v467, -inf
      %v470 = vsel %vm309, %v468, -inf
      %v471 = vmax.f32 %v469, %v470
      %v472 = vrot.slane %v471, 4
      %v473 = vmax.f32 %v471, %v472
      %v474 = vrot.slane %v473, 2
      %v475 = vmax.f32 %v473, %v474
      %v476 = vrot.slane %v475, 1
      %v477 = vmax.f32 %v475, %v476
      %vm478 = vcmp.ge.f32.partialorder %v467, %v477
      %vm479 = vcmp.ge.f32.partialorder %v468, %v477
      %v480 = vsel %vm478, %v315, 16.0
      %v481 = vsel %vm479, %v316, 16.0
      %v482 = vsel %vm309, %v480, inf
      %v483 = vsel %vm309, %v481, inf
      %v484 = vmin.f32 %v482, %v483
      %v485 = vrot.slane %v484, 4
      %v486 = vmin.f32 %v484, %v485
      %v487 = vrot.slane %v486, 2
      %v488 = vmin.f32 %v486, %v487
      %v489 = vrot.slane %v488, 1
      %v490 = vmin.f32 %v488, %v489
      %vm491 = vcmp.eq.f32.partialorder %v315, %v490
      %vm492 = vcmp.eq.f32.partialorder %v316, %v490
      %v493 = vsel %vm491, -3e+38, %v467
      %v494 = vsel %vm492, -3e+38, %v468
      %495 = vst.msk [vmem:[#allocation2] sm:$0xff] %vm309, %v493
      %496 = vst.msk [vmem:[#allocation2 + $0x8] sm:$0xff] %vm309, %v494
      %v497 = vld [vmem:[#allocation2] sm:$0xff]
      %v498 = vld [vmem:[#allocation2 + $0x8] sm:$0xff]
      %v499 = vsel %vm309, %v497, -inf
      %v500 = vsel %vm309, %v498, -inf
      %v501 = vmax.f32 %v499, %v500
      %v502 = vrot.slane %v501, 4
      %v503 = vmax.f32 %v501, %v502
      %v504 = vrot.slane %v503, 2
      %v505 = vmax.f32 %v503, %v504
      %v506 = vrot.slane %v505, 1
      %v507 = vmax.f32 %v505, %v506
      %vm508 = vcmp.ge.f32.partialorder %v497, %v507
      %vm509 = vcmp.ge.f32.partialorder %v498, %v507
      %v510 = vsel %vm508, %v315, 16.0
      %v511 = vsel %vm509, %v316, 16.0
      %v512 = vsel %vm309, %v510, inf
      %v513 = vsel %vm309, %v511, inf
      %v514 = vmin.f32 %v512, %v513
      %v515 = vrot.slane %v514, 4
      %v516 = vmin.f32 %v514, %v515
      %v517 = vrot.slane %v516, 2
      %v518 = vmin.f32 %v516, %v517
      %v519 = vrot.slane %v518, 1
      %v520 = vmin.f32 %v518, %v519
      %vm521 = vcmp.eq.f32.partialorder %v315, %v520
      %vm522 = vcmp.eq.f32.partialorder %v316, %v520
      %v523 = vsel %vm521, -3e+38, %v497
      %v524 = vsel %vm522, -3e+38, %v498
      %525 = vst.msk [vmem:[#allocation2] sm:$0xff] %vm309, %v523
      %526 = vst.msk [vmem:[#allocation2 + $0x8] sm:$0xff] %vm309, %v524
      %v527 = vld [vmem:[#allocation2] sm:$0xff]
      %v528 = vld [vmem:[#allocation2 + $0x8] sm:$0xff]
      %v529 = vsel %vm309, %v527, -inf
      %v530 = vsel %vm309, %v528, -inf
      %v531 = vmax.f32 %v529, %v530
      %v532 = vrot.slane %v531, 4
      %v533 = vmax.f32 %v531, %v532
      %v534 = vrot.slane %v533, 2
      %v535 = vmax.f32 %v533, %v534
      %v536 = vrot.slane %v535, 1
      %v537 = vmax.f32 %v535, %v536
      %vm538 = vcmp.ge.f32.partialorder %v527, %v537
      %vm539 = vcmp.ge.f32.partialorder %v528, %v537
      %v540 = vsel %vm538, %v315, 16.0
      %v541 = vsel %vm539, %v316, 16.0
      %v542 = vsel %vm309, %v540, inf
      %v543 = vsel %vm309, %v541, inf
      %v544 = vmin.f32 %v542, %v543
      %v545 = vrot.slane %v544, 4
      %v546 = vmin.f32 %v544, %v545
      %v547 = vrot.slane %v546, 2
      %v548 = vmin.f32 %v546, %v547
      %v549 = vrot.slane %v548, 1
      %v550 = vmin.f32 %v548, %v549
      %vm551 = vcmp.eq.f32.partialorder %v315, %v550
      %vm552 = vcmp.eq.f32.partialorder %v316, %v550
      %v553 = vsel %vm551, -3e+38, %v527
      %v554 = vsel %vm552, -3e+38, %v528
      %555 = vst.msk [vmem:[#allocation2] sm:$0xff] %vm309, %v553
      %556 = vst.msk [vmem:[#allocation2 + $0x8] sm:$0xff] %vm309, %v554
      %v557 = vld [vmem:[#allocation2] sm:$0xff]
      %v558 = vld [vmem:[#allocation2 + $0x8] sm:$0xff]
      %v559 = vsel %vm309, %v557, -inf
      %v560 = vsel %vm309, %v558, -inf
      %v561 = vmax.f32 %v559, %v560
      %v562 = vrot.slane %v561, 4
      %v563 = vmax.f32 %v561, %v562
      %v564 = vrot.slane %v563, 2
      %v565 = vmax.f32 %v563, %v564
      %v566 = vrot.slane %v565, 1
      %v567 = vmax.f32 %v565, %v566
      %vm568 = vcmp.ge.f32.partialorder %v557, %v567
      %vm569 = vcmp.ge.f32.partialorder %v558, %v567
      %v570 = vsel %vm568, %v315, 16.0
      %v571 = vsel %vm569, %v316, 16.0
      %v572 = vsel %vm309, %v570, inf
      %v573 = vsel %vm309, %v571, inf
      %v574 = vmin.f32 %v572, %v573
      %v575 = vrot.slane %v574, 4
      %v576 = vmin.f32 %v574, %v575
      %v577 = vrot.slane %v576, 2
      %v578 = vmin.f32 %v576, %v577
      %v579 = vrot.slane %v578, 1
      %v580 = vmin.f32 %v578, %v579
      %vm581 = vcmp.eq.f32.partialorder %v315, %v580
      %vm582 = vcmp.eq.f32.partialorder %v316, %v580
      %v583 = vsel %vm581, -3e+38, %v557
      %v584 = vsel %vm582, -3e+38, %v558
      %585 = vst.msk [vmem:[#allocation2] sm:$0xff] %vm309, %v583
      %586 = vst.msk [vmem:[#allocation2 + $0x8] sm:$0xff] %vm309, %v584
      %v587 = vld [vmem:[#allocation2] sm:$0xff]
      %v588 = vld [vmem:[#allocation2 + $0x8] sm:$0xff]
      %v589 = vsel %vm309, %v587, -inf
      %v590 = vsel %vm309, %v588, -inf
      %v591 = vmax.f32 %v589, %v590
      %v592 = vrot.slane %v591, 4
      %v593 = vmax.f32 %v591, %v592
      %v594 = vrot.slane %v593, 2
      %v595 = vmax.f32 %v593, %v594
      %v596 = vrot.slane %v595, 1
      %v597 = vmax.f32 %v595, %v596
      %vm598 = vcmp.ge.f32.partialorder %v587, %v597
      %vm599 = vcmp.ge.f32.partialorder %v588, %v597
      %v600 = vsel %vm598, %v315, 16.0
      %v601 = vsel %vm599, %v316, 16.0
      %v602 = vsel %vm309, %v600, inf
      %v603 = vsel %vm309, %v601, inf
      %v604 = vmin.f32 %v602, %v603
      %v605 = vrot.slane %v604, 4
      %v606 = vmin.f32 %v604, %v605
      %v607 = vrot.slane %v606, 2
      %v608 = vmin.f32 %v606, %v607
      %v609 = vrot.slane %v608, 1
      %v610 = vmin.f32 %v608, %v609
      %vm611 = vcmp.eq.f32.partialorder %v315, %v610
      %vm612 = vcmp.eq.f32.partialorder %v316, %v610
      %v613 = vsel %vm611, -3e+38, %v587
      %v614 = vsel %vm612, -3e+38, %v588
      %615 = vst.msk [vmem:[#allocation2] sm:$0xff] %vm309, %v613
      %616 = vst.msk [vmem:[#allocation2 + $0x8] sm:$0xff] %vm309, %v614
      %vm617 = vcmask 1040384
      %v618 = vsel %vm617, %v340, %v370
      %vm619 = vcmask 1041408
      %v620 = vsel %vm619, %v618, %v400
      %vm621 = vcmask 1042432
      %v622 = vsel %vm621, %v620, %v430
      %vm623 = vcmask 1043456
      %v624 = vsel %vm623, %v622, %v460
      %v625 = vsel %vm230, %v624, %v490
      %vm626 = vcmask 1045504
      %v627 = vsel %vm626, %v625, %v520
      %vm628 = vcmask 1046528
      %v629 = vsel %vm628, %v627, %v550
      %v630 = vsel %vm617, %v580, %v610
      %v631 = vcvt.f32.s32.to.zero.pseudo %v629
      %v632 = vcvt.f32.s32.to.zero.pseudo %v630
      %633 = vst.msk [vmem:[%s188] sm:$0xff] %vm309, %v631
      %vm634 = vcmask 123904
      %635 = vst.msk [vmem:[%s188 + $0x8] sm:$0x3] %vm634, %v632
      %p636 = scmp.lt.s32.totalorder %s17, 1
      %s637 = scalar_select %p636, %s17, 1
      %p638 = scmp.lt.s32.totalorder %s18, 0
      %s639 = scalar_select %p638, %s18, 0
      %s640 = smul.addr %s637, 2
      %s641 = sadd.s32 %s639, %s640
      %s642 = smul.addr %s641, 8
      %s643 = scalar_lea.vmem %s2, %s642
      // Predicated region
      $region29: #{knn_indices.1} parent=27 // pred_check
        %p644 = pneg %p99
      $region30: #{knn_indices.1} parent=27 // pred_check_branch
        %646 = sbr.rel (%p644) target = $region32
      $region31: #{knn_indices.1} parent=27 // pred_region
        _
      $region32: #{knn_indices.1} parent=27 // pred_fallthru
        _
    $region28: #{knn_indices.1} parent=5 // pred_fallthru
      _
    %p647 = scmp.le.s32.totalorder 2, %s8
    // Predicated region
    $region33: #{knn_indices.1} parent=5 // pred_check
      %p648 = pneg %p647
    $region34: #{knn_indices.1} parent=5 // pred_check_branch
      %650 = sbr.rel (%p648) target = $region36
    $region35: #{knn_indices.1} parent=5 // pred_region
      %s651 = ssub.s32 %s8, 2
      // Predicated region
      $region37: #{knn_indices.1} parent=35 // pred_check
        %p652 = pneg %p105
      $region38: #{knn_indices.1} parent=35 // pred_check_branch
        %654 = sbr.rel (%p652) target = $region40
      $region39: #{knn_indices.1} parent=35 // pred_region
        %p655 = scmp.lt.s32.totalorder %s19, 1
        %s656 = scalar_select %p655, %s19, 1
        %p657 = scmp.lt.s32.totalorder %s20, 0
        %s658 = scalar_select %p657, %s20, 0
        %s659 = smul.addr %s656, 2
        %s660 = sadd.s32 %s658, %s659
        %s661 = smul.addr %s660, 8
        %s662 = scalar_lea.vmem %s2, %s661
      $region40: #{knn_indices.1} parent=35 // pred_fallthru
        _
    $region36: #{knn_indices.1} parent=5 // pred_fallthru
      _
  $region6: #{knn_indices.1} parent=0 // loop_footer
    %s12 = sadd.s32 1, %s8
  $region7: #{knn_indices.1} parent=0 // loop_footer_branch
    %7 = sbr.rel target = $region3
  $region8: #{knn_indices.1} parent=0 // loop_exit
    _

</llo_original>
